<compile_context>
chip_gen: v5e
topology: v5e:2x2
jax: 0.10.0
libtpu: 0.0.40
codegen_flags: <defaults>
</compile_context>

<pallas_src>
import functools

import jax
import jax.numpy as jnp
from jax import lax
from jax.experimental import pallas as pl
from jax.experimental.pallas import tpu as pltpu


def _round_up(v, m):
    return ((v + m - 1) // m) * m


def _desitter_kernel(xy_ref, w1_ref, b1_ref, w2_ref, b2_ref, out_ref,
                     *, D, T, TB, r):
    """One batch tile of the fused encoder + de Sitter distance.

    xy_ref  : (2*TB, N)   rows [0,TB) = x tile, rows [TB,2*TB) = y tile
    w1_ref  : (N, Hp)     encoder layer-1 weight (zero-padded to Hp)
    b1_ref  : (1, Hp)     encoder layer-1 bias   (f32)
    w2_ref  : (Hp, F)     encoder layer-2 weight (zero-padded to F)
    b2_ref  : (1, F)      encoder layer-2 bias   (f32)
    out_ref : (TB, 2*F)   packed: lane 0 = distance, lanes D..D+T-1 = px,
                          lanes F+D..F+D+T-1 = py, everything else 0.
    """
    rsq = r * r

    # ---- encoder: one fused 2-layer MLP over the stacked [x;y] tile --------
    xy = xy_ref[...]
    w1 = w1_ref[...]
    w2 = w2_ref[...]
    h = jnp.dot(xy, w1, preferred_element_type=jnp.float32) + b1_ref[...]
    h = jnp.maximum(h, 0.0)                       # ReLU (f32)
    h = h.astype(w2.dtype)                        # bf16 second matmul if enabled
    e = jnp.dot(h, w2, preferred_element_type=jnp.float32) + b2_ref[...]
    # e: (2*TB, F) f32; lanes >= D+T are exactly zero (zero-padded w2/b2 cols).

    # ---- fused per-row reductions on the lane-dense encoder output ---------
    lane2 = lax.broadcasted_iota(jnp.int32, e.shape, 1)
    space_mask2 = lane2 < D
    time_mask2 = (lane2 >= D) & (lane2 < D + T)

    sq = e * e
    space_sumsq = jnp.sum(jnp.where(space_mask2, sq, 0.0),
                          axis=-1, keepdims=True)             # (2*TB, 1)
    time_sumsq = jnp.sum(jnp.where(time_mask2, sq, 0.0),
                         axis=-1, keepdims=True)              # (2*TB, 1)

    # scale = sqrt(rsq + ||time||^2) / max(||space||, 1e-12)
    #       = sqrt(rsq + ||time||^2) * rsqrt(max(||space||^2, 1e-24))
    scale = jnp.sqrt(rsq + time_sumsq) * lax.rsqrt(
        jnp.maximum(space_sumsq, 1e-24))                      # (2*TB, 1)

    ex = e[:TB]
    ey = e[TB:]
    sx = scale[:TB]
    sy = scale[TB:]

    lane = lax.broadcasted_iota(jnp.int32, ex.shape, 1)
    space_mask = lane < D
    time_mask = (lane >= D) & (lane < D + T)

    prod = ex * ey
    space_dot = jnp.sum(jnp.where(space_mask, prod, 0.0),
                        axis=-1, keepdims=True)               # (TB, 1)
    time_dot = jnp.sum(jnp.where(time_mask, prod, 0.0),
                       axis=-1, keepdims=True)                # (TB, 1)

    aaa = sx * sy * space_dot - time_dot                      # (TB, 1)

    # ---- de Sitter distance -------------------------------------------------
    geodesic = aaa > rsq
    z = jnp.maximum(aaa / rsq, 1.0)                           # acosh arg >= 1
    zm1 = z - 1.0
    # acosh(z) = log(z + sqrt((z-1)(z+1)))  -- no z*z-1 cancellation near z=1.
    acosh = jnp.log(z + jnp.sqrt(zm1 * (z + 1.0)))
    distance = jnp.where(geodesic, rsq * acosh * acosh,
                         2.0 * (aaa - rsq))                   # (TB, 1)

    # ---- pack one lane-dense output slab: [dist | px] ++ [py] ---------------
    ex_time = jnp.where(time_mask, ex, 0.0)   # nonzero only on lanes D..D+T-1
    ey_time = jnp.where(time_mask, ey, 0.0)
    left = jnp.where(lane == 0, distance, 0.0) + ex_time      # (TB, F)
    out_ref[...] = jnp.concatenate([left, ey_time], axis=-1)  # (TB, 2*F)


def desitter_forward(x, y, params, *, D, T, r=1.0, block_b=512,
                     use_bf16_matmul=False):
    """Fused DeSitterNeuralNetwork.forward.

    x, y   : (B, N) float32
    params : (w1 (N,H), b1 (1,H) or (H,), w2 (H,D+T), b2 (1,D+T) or (D+T,))
    Returns (distance (B,1), partialorder_x (B,T), partialorder_y (B,T)), f32.
    """
    B, N = x.shape
    w1, b1, w2, b2 = params
    H = w1.shape[1]
    DT = w2.shape[1]
    assert DT == D + T
    assert D >= 1 and T >= 1

    F = _round_up(DT, 128)                    # lane-dense encoder output width
    Hp = _round_up(H, 128)                    # lane-dense hidden width

    mm_dtype = jnp.bfloat16 if use_bf16_matmul else jnp.float32

    # Zero-pad encoder params once (wrapper-side XLA, tiny).
    w1p = jnp.pad(w1, ((0, 0), (0, Hp - H))).astype(mm_dtype)
    b1p = jnp.pad(b1.reshape(1, -1), ((0, 0), (0, Hp - H))).astype(jnp.float32)
    w2p = jnp.pad(w2, ((0, Hp - H), (0, F - DT))).astype(mm_dtype)
    b2p = jnp.pad(b2.reshape(1, -1), ((0, 0), (0, F - DT))).astype(jnp.float32)

    # Batch tiling: TB rows per grid step (multiple of 8).
    TB = min(int(block_b), _round_up(B, 8))
    TB = _round_up(TB, 8)
    nt = pl.cdiv(B, TB)
    Bp = nt * TB

    x_p = jnp.pad(x, ((0, Bp - B), (0, 0))).astype(mm_dtype)
    y_p = jnp.pad(y, ((0, Bp - B), (0, 0))).astype(mm_dtype)
    # Interleave per tile: block i = [x tile i ; y tile i] -> single encode().
    xy = jnp.concatenate(
        [x_p.reshape(nt, TB, N), y_p.reshape(nt, TB, N)], axis=1
    ).reshape(nt * 2 * TB, N)

    kernel = functools.partial(_desitter_kernel, D=D, T=T, TB=TB, r=float(r))

    isz = jnp.dtype(mm_dtype).itemsize
    cost = pl.CostEstimate(
        flops=2 * (2 * Bp) * (N * Hp + Hp * F) + 24 * Bp * F,
        transcendentals=8 * Bp,
        bytes_accessed=(xy.size * isz
                        + (w1p.size + w2p.size) * isz
                        + (b1p.size + b2p.size) * 4
                        + Bp * 2 * F * 4),
    )

    packed = pl.pallas_call(
        kernel,
        out_shape=jax.ShapeDtypeStruct((Bp, 2 * F), jnp.float32),
        grid=(nt,),
        in_specs=[
            pl.BlockSpec((2 * TB, N), lambda i: (i, 0)),   # [x;y] batch tile
            pl.BlockSpec((N, Hp), lambda i: (0, 0)),       # w1 (resident)
            pl.BlockSpec((1, Hp), lambda i: (0, 0)),       # b1 (resident)
            pl.BlockSpec((Hp, F), lambda i: (0, 0)),       # w2 (resident)
            pl.BlockSpec((1, F), lambda i: (0, 0)),        # b2 (resident)
        ],
        out_specs=pl.BlockSpec((TB, 2 * F), lambda i: (i, 0)),
        compiler_params=pltpu.CompilerParams(
            dimension_semantics=("parallel",)),
        cost_estimate=cost,
    )(xy, w1p, b1p, w2p, b2p)

    # Cheap wrapper-side unpacking of the lane-dense slab.
    distance = packed[:B, 0:1]
    px = packed[:B, D:D + T]
    py = packed[:B, F + D:F + D + T]
    return distance, px, py


def _reference(x, y, params, *, D, T, r=1.0, use_bf16_matmul=False):
    """Pure-JAX reference mirroring the PyTorch module."""
    w1, b1, w2, b2 = params
    rsq = r * r
    mm = jnp.bfloat16 if use_bf16_matmul else jnp.float32

    def encode(v):
        h = jnp.dot(v.astype(mm), w1.astype(mm),
                    preferred_element_type=jnp.float32) + b1.reshape(1, -1)
        h = jnp.maximum(h, 0.0)
        return jnp.dot(h.astype(mm), w2.astype(mm),
                       preferred_element_type=jnp.float32) + b2.reshape(1, -1)

    ex, ey = encode(x), encode(y)
    ex_s, ey_s = ex[:, :D], ey[:, :D]
    ex_t, ey_t = ex[:, D:], ey[:, D:]

    def norm(v):
        n = jnp.sqrt(jnp.sum(v * v, -1, keepdims=True))
        return v / jnp.maximum(n, 1e-12)

    ex_s = r * norm(ex_s)
    ey_s = r * norm(ey_s)
    ex_s = jnp.sqrt(rsq + jnp.sum(ex_t * ex_t, -1, keepdims=True)) * ex_s / r
    ey_s = jnp.sqrt(rsq + jnp.sum(ey_t * ey_t, -1, keepdims=True)) * ey_s / r
    aaa = jnp.sum(ex_s * ey_s, -1) - jnp.sum(ex_t * ey_t, -1)
    geo = aaa > rsq
    safe = jnp.maximum(aaa / rsq, 1.0)
    dist = jnp.where(geo, rsq * jnp.arccosh(safe) ** 2, 2.0 * (aaa - rsq))
    return dist[:, None], ex_t, ey_t


if __name__ == "__main__":
    # Small, module-consistent shapes (hidden_dim=100 per module default).
    B, N, D, T, H = 8, 16, 4, 4, 100
    key = jax.random.PRNGKey(0)
    kx, ky, k1, k2, k3, k4 = jax.random.split(key, 6)

    x = jax.random.normal(kx, (B, N), dtype=jnp.float32)
    y = jax.random.normal(ky, (B, N), dtype=jnp.float32)
    w1 = jax.random.normal(k1, (N, H), dtype=jnp.float32) * 0.1
    b1 = jax.random.normal(k2, (1, H), dtype=jnp.float32) * 0.1
    w2 = jax.random.normal(k3, (H, D + T), dtype=jnp.float32) * 0.1
    b2 = jax.random.normal(k4, (1, D + T), dtype=jnp.float32) * 0.1
    params = (w1, b1, w2, b2)

    # 1) f32 path, tiny batch (single tile).
    dist, px, py = desitter_forward(x, y, params, D=D, T=T, r=1.0)
    jax.block_until_ready((dist, px, py))
    dist_r, px_r, py_r = _reference(x, y, params, D=D, T=T, r=1.0)
    assert dist.shape == (B, 1) and px.shape == (B, T) and py.shape == (B, T)
    assert jnp.allclose(dist, dist_r, atol=1e-4, rtol=1e-4)
    assert jnp.allclose(px, px_r, atol=1e-4, rtol=1e-4)
    assert jnp.allclose(py, py_r, atol=1e-4, rtol=1e-4)

    # 2) f32 path, ragged multi-tile batch (exercises tiling + row padding).
    B2 = 300
    kx2, ky2 = jax.random.split(jax.random.PRNGKey(1), 2)
    x2 = jax.random.normal(kx2, (B2, N), dtype=jnp.float32)
    y2 = jax.random.normal(ky2, (B2, N), dtype=jnp.float32)
    dist2, px2, py2 = desitter_forward(x2, y2, params, D=D, T=T, r=1.0,
                                       block_b=128)
    jax.block_until_ready((dist2, px2, py2))
    dist2_r, px2_r, py2_r = _reference(x2, y2, params, D=D, T=T, r=1.0)
    assert dist2.shape == (B2, 1) and px2.shape == (B2, T)
    assert jnp.allclose(dist2, dist2_r, atol=1e-4, rtol=1e-4)
    assert jnp.allclose(px2, px2_r, atol=1e-4, rtol=1e-4)
    assert jnp.allclose(py2, py2_r, atol=1e-4, rtol=1e-4)

    # 3) bf16-matmul path (v6e/v7x bandwidth optimization), checked against a
    #    reference using the same matmul precision; distance math stays f32.
    dist3, px3, py3 = desitter_forward(x2, y2, params, D=D, T=T, r=1.0,
                                       block_b=128, use_bf16_matmul=True)
    jax.block_until_ready((dist3, px3, py3))
    dist3_r, px3_r, py3_r = _reference(x2, y2, params, D=D, T=T, r=1.0,
                                       use_bf16_matmul=True)
    assert jnp.allclose(dist3, dist3_r, atol=2e-3, rtol=2e-3)
    assert jnp.allclose(px3, px3_r, atol=2e-3, rtol=2e-3)
    assert jnp.allclose(py3, py3_r, atol=2e-3, rtol=2e-3)

    print("KERNEL_OK")
</pallas_src>

<mosaic_0001>
module attributes {stable_mosaic.version = 11 : i64} {
  func.func @_desitter_kernel(%arg0: i32, %arg1: memref<16x16xf32, #tpu.memory_space<vmem>>, %arg2: memref<16x128xf32, #tpu.memory_space<vmem>>, %arg3: memref<1x128xf32, #tpu.memory_space<vmem>>, %arg4: memref<128x128xf32, #tpu.memory_space<vmem>>, %arg5: memref<1x128xf32, #tpu.memory_space<vmem>>, %arg6: memref<8x256xf32, #tpu.memory_space<vmem>>) attributes {dimension_semantics = [#tpu.dimension_semantics<parallel>], iteration_bounds = array<i64: 1>, scalar_prefetch = 0 : i64, scratch_operands = 0 : i64, tpu.core_type = #tpu.core_type<tc>, window_params = [{transform_indices = @transform_0, window_bounds = array<i64: 16, 16>}, {pipeline_mode = #tpu.pipeline_mode<synchronous>, transform_indices = @transform_1, window_bounds = array<i64: 16, 128>}, {pipeline_mode = #tpu.pipeline_mode<synchronous>, transform_indices = @transform_2, window_bounds = array<i64: 1, 128>}, {pipeline_mode = #tpu.pipeline_mode<synchronous>, transform_indices = @transform_3, window_bounds = array<i64: 128, 128>}, {pipeline_mode = #tpu.pipeline_mode<synchronous>, transform_indices = @transform_4, window_bounds = array<i64: 1, 128>}, {transform_indices = @transform_5, window_bounds = array<i64: 8, 256>}]} {
    %c0 = arith.constant 0 : index
    %c0_0 = arith.constant 0 : index
    %0 = vector.load %arg1[%c0, %c0_0] : memref<16x16xf32, #tpu.memory_space<vmem>>, vector<16x16xf32>
    %c0_1 = arith.constant 0 : index
    %c0_2 = arith.constant 0 : index
    %1 = vector.load %arg2[%c0_1, %c0_2] : memref<16x128xf32, #tpu.memory_space<vmem>>, vector<16x128xf32>
    %c0_3 = arith.constant 0 : index
    %c0_4 = arith.constant 0 : index
    %2 = vector.load %arg4[%c0_3, %c0_4] : memref<128x128xf32, #tpu.memory_space<vmem>>, vector<128x128xf32>
    %cst = arith.constant dense<0.000000e+00> : vector<16x128xf32>
    %3 = tpu.matmul %0, %1, %cst {dimension_numbers = #tpu.dot_dimension_numbers<[1], [0], [0], [1], [0, 0, 1, 1], [], []>} : vector<16x16xf32>, vector<16x128xf32>, vector<16x128xf32> -> vector<16x128xf32>
    %c0_5 = arith.constant 0 : index
    %c0_6 = arith.constant 0 : index
    %4 = vector.load %arg3[%c0_5, %c0_6] : memref<1x128xf32, #tpu.memory_space<vmem>>, vector<1x128xf32>
    %5 = vector.broadcast %4 : vector<1x128xf32> to vector<16x128xf32>
    %6 = arith.addf %3, %5 : vector<16x128xf32>
    %cst_7 = arith.constant 0.000000e+00 : f32
    %7 = vector.broadcast %cst_7 : f32 to vector<16x128xf32>
    %8 = arith.maximumf %6, %7 : vector<16x128xf32>
    %cst_8 = arith.constant dense<0.000000e+00> : vector<16x128xf32>
    %9 = tpu.matmul %8, %2, %cst_8 {dimension_numbers = #tpu.dot_dimension_numbers<[1], [0], [0], [1], [0, 0, 1, 1], [], []>} : vector<16x128xf32>, vector<128x128xf32>, vector<16x128xf32> -> vector<16x128xf32>
    %c0_9 = arith.constant 0 : index
    %c0_10 = arith.constant 0 : index
    %10 = vector.load %arg5[%c0_9, %c0_10] : memref<1x128xf32, #tpu.memory_space<vmem>>, vector<1x128xf32>
    %11 = vector.broadcast %10 : vector<1x128xf32> to vector<16x128xf32>
    %12 = arith.addf %9, %11 : vector<16x128xf32>
    %13 = tpu.iota {dimensions = array<i32: 1>} : vector<16x128xi32>
    %c4_i32 = arith.constant 4 : i32
    %14 = vector.broadcast %c4_i32 : i32 to vector<16x128xi32>
    %15 = arith.cmpi slt, %13, %14 : vector<16x128xi32>
    %c4_i32_11 = arith.constant 4 : i32
    %16 = vector.broadcast %c4_i32_11 : i32 to vector<16x128xi32>
    %17 = arith.cmpi sge, %13, %16 : vector<16x128xi32>
    %c8_i32 = arith.constant 8 : i32
    %18 = vector.broadcast %c8_i32 : i32 to vector<16x128xi32>
    %19 = arith.cmpi slt, %13, %18 : vector<16x128xi32>
    %20 = arith.andi %17, %19 : vector<16x128xi1>
    %21 = arith.mulf %12, %12 : vector<16x128xf32>
    %cst_12 = arith.constant 0.000000e+00 : f32
    %22 = vector.broadcast %cst_12 : f32 to vector<16x128xf32>
    %23 = arith.select %15, %21, %22 : vector<16x128xi1>, vector<16x128xf32>
    %cst_13 = arith.constant dense<0.000000e+00> : vector<16xf32>
    %24 = vector.multi_reduction <add>, %23, %cst_13 [1] : vector<16x128xf32> to vector<16xf32>
    %25 = vector.shape_cast %24 : vector<16xf32> to vector<16x1xf32>
    %cst_14 = arith.constant 0.000000e+00 : f32
    %26 = vector.broadcast %cst_14 : f32 to vector<16x128xf32>
    %27 = arith.select %20, %21, %26 : vector<16x128xi1>, vector<16x128xf32>
    %cst_15 = arith.constant dense<0.000000e+00> : vector<16xf32>
    %28 = vector.multi_reduction <add>, %27, %cst_15 [1] : vector<16x128xf32> to vector<16xf32>
    %29 = vector.shape_cast %28 : vector<16xf32> to vector<16x1xf32>
    %cst_16 = arith.constant 1.000000e+00 : f32
    %30 = vector.broadcast %cst_16 : f32 to vector<16x1xf32>
    %31 = arith.addf %30, %29 : vector<16x1xf32>
    %32 = math.sqrt %31 : vector<16x1xf32>
    %cst_17 = arith.constant 1.000000e-24 : f32
    %33 = vector.broadcast %cst_17 : f32 to vector<16x1xf32>
    %34 = arith.maximumf %25, %33 : vector<16x1xf32>
    %35 = math.rsqrt %34 : vector<16x1xf32>
    %36 = arith.mulf %32, %35 : vector<16x1xf32>
    %37 = vector.extract_strided_slice %12 {offsets = [0, 0], sizes = [8, 128], strides = [1, 1]} : vector<16x128xf32> to vector<8x128xf32>
    %38 = vector.extract_strided_slice %12 {offsets = [8, 0], sizes = [8, 128], strides = [1, 1]} : vector<16x128xf32> to vector<8x128xf32>
    %39 = vector.extract_strided_slice %36 {offsets = [0, 0], sizes = [8, 1], strides = [1, 1]} : vector<16x1xf32> to vector<8x1xf32>
    %40 = vector.extract_strided_slice %36 {offsets = [8, 0], sizes = [8, 1], strides = [1, 1]} : vector<16x1xf32> to vector<8x1xf32>
    %41 = tpu.iota {dimensions = array<i32: 1>} : vector<8x128xi32>
    %c4_i32_18 = arith.constant 4 : i32
    %42 = vector.broadcast %c4_i32_18 : i32 to vector<8x128xi32>
    %43 = arith.cmpi slt, %41, %42 : vector<8x128xi32>
    %c4_i32_19 = arith.constant 4 : i32
    %44 = vector.broadcast %c4_i32_19 : i32 to vector<8x128xi32>
    %45 = arith.cmpi sge, %41, %44 : vector<8x128xi32>
    %c8_i32_20 = arith.constant 8 : i32
    %46 = vector.broadcast %c8_i32_20 : i32 to vector<8x128xi32>
    %47 = arith.cmpi slt, %41, %46 : vector<8x128xi32>
    %48 = arith.andi %45, %47 : vector<8x128xi1>
    %49 = arith.mulf %37, %38 : vector<8x128xf32>
    %cst_21 = arith.constant 0.000000e+00 : f32
    %50 = vector.broadcast %cst_21 : f32 to vector<8x128xf32>
    %51 = arith.select %43, %49, %50 : vector<8x128xi1>, vector<8x128xf32>
    %cst_22 = arith.constant dense<0.000000e+00> : vector<8xf32>
    %52 = vector.multi_reduction <add>, %51, %cst_22 [1] : vector<8x128xf32> to vector<8xf32>
    %53 = vector.shape_cast %52 : vector<8xf32> to vector<8x1xf32>
    %cst_23 = arith.constant 0.000000e+00 : f32
    %54 = vector.broadcast %cst_23 : f32 to vector<8x128xf32>
    %55 = arith.select %48, %49, %54 : vector<8x128xi1>, vector<8x128xf32>
    %cst_24 = arith.constant dense<0.000000e+00> : vector<8xf32>
    %56 = vector.multi_reduction <add>, %55, %cst_24 [1] : vector<8x128xf32> to vector<8xf32>
    %57 = vector.shape_cast %56 : vector<8xf32> to vector<8x1xf32>
    %58 = arith.mulf %39, %40 : vector<8x1xf32>
    %59 = arith.mulf %58, %53 : vector<8x1xf32>
    %60 = arith.subf %59, %57 : vector<8x1xf32>
    %cst_25 = arith.constant 1.000000e+00 : f32
    %61 = vector.broadcast %cst_25 : f32 to vector<8x1xf32>
    %62 = arith.cmpf ogt, %60, %61 : vector<8x1xf32>
    %cst_26 = arith.constant 1.000000e+00 : f32
    %63 = vector.broadcast %cst_26 : f32 to vector<8x1xf32>
    %64 = arith.divf %60, %63 : vector<8x1xf32>
    %cst_27 = arith.constant 1.000000e+00 : f32
    %65 = vector.broadcast %cst_27 : f32 to vector<8x1xf32>
    %66 = arith.maximumf %64, %65 : vector<8x1xf32>
    %cst_28 = arith.constant 1.000000e+00 : f32
    %67 = vector.broadcast %cst_28 : f32 to vector<8x1xf32>
    %68 = arith.subf %66, %67 : vector<8x1xf32>
    %cst_29 = arith.constant 1.000000e+00 : f32
    %69 = vector.broadcast %cst_29 : f32 to vector<8x1xf32>
    %70 = arith.addf %66, %69 : vector<8x1xf32>
    %71 = arith.mulf %68, %70 : vector<8x1xf32>
    %72 = math.sqrt %71 : vector<8x1xf32>
    %73 = arith.addf %66, %72 : vector<8x1xf32>
    %74 = math.log %73 : vector<8x1xf32>
    %cst_30 = arith.constant 1.000000e+00 : f32
    %75 = vector.broadcast %cst_30 : f32 to vector<8x1xf32>
    %76 = arith.mulf %75, %74 : vector<8x1xf32>
    %77 = arith.mulf %76, %74 : vector<8x1xf32>
    %cst_31 = arith.constant 1.000000e+00 : f32
    %78 = vector.broadcast %cst_31 : f32 to vector<8x1xf32>
    %79 = arith.subf %60, %78 : vector<8x1xf32>
    %cst_32 = arith.constant 2.000000e+00 : f32
    %80 = vector.broadcast %cst_32 : f32 to vector<8x1xf32>
    %81 = arith.mulf %80, %79 : vector<8x1xf32>
    %82 = arith.select %62, %77, %81 : vector<8x1xi1>, vector<8x1xf32>
    %cst_33 = arith.constant 0.000000e+00 : f32
    %83 = vector.broadcast %cst_33 : f32 to vector<8x128xf32>
    %84 = arith.select %48, %37, %83 : vector<8x128xi1>, vector<8x128xf32>
    %cst_34 = arith.constant 0.000000e+00 : f32
    %85 = vector.broadcast %cst_34 : f32 to vector<8x128xf32>
    %86 = arith.select %48, %38, %85 : vector<8x128xi1>, vector<8x128xf32>
    %c0_i32 = arith.constant 0 : i32
    %87 = vector.broadcast %c0_i32 : i32 to vector<8x128xi32>
    %88 = arith.cmpi eq, %41, %87 : vector<8x128xi32>
    %cst_35 = arith.constant 0.000000e+00 : f32
    %89 = vector.shape_cast %82 : vector<8x1xf32> to vector<8x1xf32>
    %90 = vector.broadcast %89 : vector<8x1xf32> to vector<8x128xf32>
    %91 = vector.broadcast %cst_35 : f32 to vector<8x128xf32>
    %92 = arith.select %88, %90, %91 : vector<8x128xi1>, vector<8x128xf32>
    %93 = arith.addf %92, %84 : vector<8x128xf32>
    %94 = tpu.concatenate %93, %86 in 1 : vector<8x128xf32>, vector<8x128xf32> -> vector<8x256xf32>
    %c0_36 = arith.constant 0 : index
    %c0_37 = arith.constant 0 : index
    %95 = vector.load %arg6[%c0_36, %c0_37] : memref<8x256xf32, #tpu.memory_space<vmem>>, vector<8x256xf32>
    tpu.vector_store %arg6[%c0_36, %c0_37], %94 {strides = array<i32>} : memref<8x256xf32, #tpu.memory_space<vmem>>, vector<8x256xf32>,
    return
  }
  func.func @transform_0(%arg0: i32) -> (i32, i32) {
    %c0_i32 = arith.constant 0 : i32
    %c0_i32_0 = arith.constant 0 : i32
    return %arg0, %c0_i32 : i32, i32
  }
  func.func @transform_1(%arg0: i32) -> (i32, i32) {
    %c0_i32 = arith.constant 0 : i32
    %c0_i32_0 = arith.constant 0 : i32
    %c0_i32_1 = arith.constant 0 : i32
    return %c0_i32, %c0_i32_0 : i32, i32
  }
  func.func @transform_2(%arg0: i32) -> (i32, i32) {
    %c0_i32 = arith.constant 0 : i32
    %c0_i32_0 = arith.constant 0 : i32
    %c0_i32_1 = arith.constant 0 : i32
    return %c0_i32, %c0_i32_0 : i32, i32
  }
  func.func @transform_3(%arg0: i32) -> (i32, i32) {
    %c0_i32 = arith.constant 0 : i32
    %c0_i32_0 = arith.constant 0 : i32
    %c0_i32_1 = arith.constant 0 : i32
    return %c0_i32, %c0_i32_0 : i32, i32
  }
  func.func @transform_4(%arg0: i32) -> (i32, i32) {
    %c0_i32 = arith.constant 0 : i32
    %c0_i32_0 = arith.constant 0 : i32
    %c0_i32_1 = arith.constant 0 : i32
    return %c0_i32, %c0_i32_0 : i32, i32
  }
  func.func @transform_5(%arg0: i32) -> (i32, i32) {
    %c0_i32 = arith.constant 0 : i32
    %c0_i32_0 = arith.constant 0 : i32
    return %arg0, %c0_i32 : i32, i32
  }
}

</mosaic_0001>

<llo_original>
// kernel: tpu_custom_call.1
$region0: #{tpu_custom_call.1}
  #allocation0 [shape = 'u32[]', space=smem, size = 0x4, offset = 0x4, fixed_abs, tag = 'smem constant byte address 0x4 - core index']
  #allocation1 [shape = 'u32[72,128]{1,0:T(1,128)}', space=vmem, size = 0x9000, scoped, tag = 'internal scratch']
  %s0 = inlined_call_operand.hbm [shape: f32[16,16], index: 0, kind: input, shape index: {}]
  %s1 = inlined_call_operand.hbm [shape: f32[16,128], index: 1, kind: input, shape index: {}]
  %s2 = inlined_call_operand.vmem [shape: f32[1,128], index: 2, kind: input, shape index: {}]
  %s3 = inlined_call_operand.hbm [shape: f32[128,128], index: 3, kind: input, shape index: {}]
  %s4 = inlined_call_operand.vmem [shape: f32[1,128], index: 4, kind: input, shape index: {}]
  %s5 = inlined_call_operand.hbm [shape: f32[8,256], index: 5, kind: output, shape index: {}]
  %s6 = sld [smem:[#allocation0]]
  $region42: #{tpu_custom_call.1} parent=0
    _
  %s8 = ssub.s32 1, %s6
  %s9 = scalar_select 0, %s8, %s6
  $region1: #{tpu_custom_call.1} parent=0
    #allocation2 [shape = 'u8[8192]{0}', space=vmem, size = 0x2000, scoped, tag = 'input window, operand 0, single buffered']
    #allocation3 [shape = 's32[1]{0}', space=sflag, size = 0x4, scoped, tag = 'scoped memory for tpu_custom_call.1']
    #allocation4 [shape = 's32[1]{0}', space=sflag, size = 0x4, scoped, tag = 'scoped memory for tpu_custom_call.1']
    #allocation5 [shape = 'u8[8192]{0}', space=vmem, size = 0x2000, scoped, tag = 'input window, operand 1, single buffered']
    #allocation6 [shape = 's32[1]{0}', space=sflag, size = 0x4, scoped, tag = 'scoped memory for tpu_custom_call.1']
    #allocation7 [shape = 'u8[65536]{0}', space=vmem, size = 0x10000, scoped, tag = 'input window, operand 3, single buffered']
    #allocation8 [shape = 'u8[8192]{0}', space=vmem, size = 0x2000, scoped, tag = 'output window, operand 0, single buffered']
    %10 = vsyncpa [#allocation3], 0
    %11 = vsyncpa [#allocation6], 0
    %12 = vsyncpa [#allocation4], 0
    // Predicated region
    $region2: #{tpu_custom_call.1} parent=1 // pred_check
      _
    $region3: #{tpu_custom_call.1} parent=1 // pred_check_branch
      %14 = sbr.rel (0) target = $region5
    $region4: #{tpu_custom_call.1} parent=1 // pred_region
      %16 = vsyncadd [#allocation3], 0
      %s17 = sshll.u32 %s0, 4
      %s18 = int_to_ptr.hbm [resolvable:$true] %s17
      %s19 = sshll.u32 [#allocation2], 4
      %s20 = int_to_ptr.vmem [resolvable:$true] %s19
      %25 = dma.hbm_to_vmem [thread:$0]  %s18, 256, %s20, [#allocation3], 128, 128, 8
    $region5: #{tpu_custom_call.1} parent=1 // pred_fallthru
      _
    // Predicated region
    $region6: #{tpu_custom_call.1} parent=1 // pred_check
      _
    $region7: #{tpu_custom_call.1} parent=1 // pred_check_branch
      %27 = sbr.rel (0) target = $region9
    $region8: #{tpu_custom_call.1} parent=1 // pred_region
      %29 = vsyncadd [#allocation6], 0
      %s30 = sshll.u32 %s1, 4
      %s31 = int_to_ptr.hbm [resolvable:$true] %s30
      %s32 = sshll.u32 [#allocation5], 4
      %s33 = int_to_ptr.vmem [resolvable:$true] %s32
      %38 = dma.hbm_to_vmem [thread:$0]  %s31, 256, %s33, [#allocation6], 128, 128, 8
    $region9: #{tpu_custom_call.1} parent=1 // pred_fallthru
      _
    // Predicated region
    $region10: #{tpu_custom_call.1} parent=1 // pred_check
      _
    $region11: #{tpu_custom_call.1} parent=1 // pred_check_branch
      %40 = sbr.rel (0) target = $region13
    $region12: #{tpu_custom_call.1} parent=1 // pred_region
      _
    $region13: #{tpu_custom_call.1} parent=1 // pred_fallthru
      _
    // Predicated region
    $region14: #{tpu_custom_call.1} parent=1 // pred_check
      _
    $region15: #{tpu_custom_call.1} parent=1 // pred_check_branch
      %42 = sbr.rel (0) target = $region17
    $region16: #{tpu_custom_call.1} parent=1 // pred_region
      %44 = vsyncadd [#allocation6], 0
      %s45 = sshll.u32 %s3, 4
      %s46 = int_to_ptr.hbm [resolvable:$true] %s45
      %s47 = sshll.u32 [#allocation7], 4
      %s48 = int_to_ptr.vmem [resolvable:$true] %s47
      %53 = dma.hbm_to_vmem [thread:$0]  %s46, 2048, %s48, [#allocation6], 128, 128, 8
    $region17: #{tpu_custom_call.1} parent=1 // pred_fallthru
      _
    // Predicated region
    $region18: #{tpu_custom_call.1} parent=1 // pred_check
      _
    $region19: #{tpu_custom_call.1} parent=1 // pred_check_branch
      %55 = sbr.rel (0) target = $region21
    $region20: #{tpu_custom_call.1} parent=1 // pred_region
      _
    $region21: #{tpu_custom_call.1} parent=1 // pred_fallthru
      _
    // Predicated region
    $region22: #{tpu_custom_call.1} parent=1 // pred_check
      _
    $region23: #{tpu_custom_call.1} parent=1 // pred_check_branch
      %57 = sbr.rel (0) target = $region25
    $region24: #{tpu_custom_call.1} parent=1 // pred_region
      %59 = dma.done [#allocation3], 256
    $region25: #{tpu_custom_call.1} parent=1 // pred_fallthru
      _
    // Predicated region
    $region26: #{tpu_custom_call.1} parent=1 // pred_check
      _
    $region27: #{tpu_custom_call.1} parent=1 // pred_check_branch
      %61 = sbr.rel (0) target = $region29
    $region28: #{tpu_custom_call.1} parent=1 // pred_region
      %63 = dma.done [#allocation6], 256
    $region29: #{tpu_custom_call.1} parent=1 // pred_fallthru
      _
    // Predicated region
    $region30: #{tpu_custom_call.1} parent=1 // pred_check
      _
    $region31: #{tpu_custom_call.1} parent=1 // pred_check_branch
      %65 = sbr.rel (0) target = $region33
    $region32: #{tpu_custom_call.1} parent=1 // pred_region
      %67 = dma.done [#allocation6], 2048
    $region33: #{tpu_custom_call.1} parent=1 // pred_fallthru
      _
    %v68 = vld [vmem:[#allocation2] sm:$0xff]
    %v69 = vld [vmem:[#allocation2 + $0x8] sm:$0xff]
    %v70 = vld [vmem:[#allocation5] sm:$0xff]
    %v71 = vld [vmem:[#allocation5 + $0x8] sm:$0xff]
    %v72 = vld [vmem:[#allocation7] sm:$0xff]
    %v73 = vld [vmem:[#allocation7 + $0x8] sm:$0xff]
    %v74 = vld [vmem:[#allocation7 + $0x10] sm:$0xff]
    %v75 = vld [vmem:[#allocation7 + $0x18] sm:$0xff]
    %v76 = vld [vmem:[#allocation7 + $0x20] sm:$0xff]
    %v77 = vld [vmem:[#allocation7 + $0x28] sm:$0xff]
    %v78 = vld [vmem:[#allocation7 + $0x30] sm:$0xff]
    %v79 = vld [vmem:[#allocation7 + $0x38] sm:$0xff]
    %v80 = vld [vmem:[#allocation7 + $0x40] sm:$0xff]
    %v81 = vld [vmem:[#allocation7 + $0x48] sm:$0xff]
    %v82 = vld [vmem:[#allocation7 + $0x50] sm:$0xff]
    %v83 = vld [vmem:[#allocation7 + $0x58] sm:$0xff]
    %v84 = vld [vmem:[#allocation7 + $0x60] sm:$0xff]
    %v85 = vld [vmem:[#allocation7 + $0x68] sm:$0xff]
    %v86 = vld [vmem:[#allocation7 + $0x70] sm:$0xff]
    %v87 = vld [vmem:[#allocation7 + $0x78] sm:$0xff]
    %v88 = vld [vmem:[%s2] sm:$0x1]
    %v90 = vperm.slane %v88, 0
    %vm92 = vcmask 130048
    %v94 = vsel %vm92, %v68, 0
    %v97 = vsel %vm92, %v69, 0
    %99 = vmatpush.msra.mxu0 0.0
    %100 = vmatpush.msra.mxu0 0.0
    %101 = vmatpush.msra.mxu0 0.0
    %102 = vmatpush.msra.mxu0 0.0
    %103 = vmatpush.msra.mxu0 0.0
    %104 = vmatpush.msra.mxu0 0.0
    %105 = vmatpush.msra.mxu0 0.0
    %106 = vmatpush.msra.mxu0 0.0
    %107 = vmatpush.msra.mxu0 0.0
    %108 = vmatpush.msra.mxu0 0.0
    %109 = vmatpush.msra.mxu0 0.0
    %110 = vmatpush.msra.mxu0 0.0
    %111 = vmatpush.msra.mxu0 0.0
    %112 = vmatpush.msra.mxu0 0.0
    %113 = vmatpush.msra.mxu0 %v71
    %114 = vmatpush.msra.mxu0 %v70
    %115 = vmatmul.f32.gmra.mxu0 %v94
    %v116 = vpop.f32.mrf.mxu0
    %v117 = vadd.f32 %v90, %v116
    %118 = vmatmul.f32.gmra.mxu0 %v97
    %v119 = vpop.f32.mrf.mxu0
    %v120 = vadd.f32 %v90, %v119
    %121 = vdwg.mxu0
    %v122 = vmax.f32 %v117, 0.0
    %v123 = vmax.f32 %v120, 0.0
    %v124 = vld [vmem:[%s4] sm:$0x1]
    %v126 = vperm.slane %v124, 0
    %128 = vmatpush.msra.mxu0 %v87
    %129 = vmatpush.msra.mxu0 %v86
    %130 = vmatpush.msra.mxu0 %v85
    %131 = vmatpush.msra.mxu0 %v84
    %132 = vmatpush.msra.mxu0 %v83
    %133 = vmatpush.msra.mxu0 %v82
    %134 = vmatpush.msra.mxu0 %v81
    %135 = vmatpush.msra.mxu0 %v80
    %136 = vmatpush.msra.mxu0 %v79
    %137 = vmatpush.msra.mxu0 %v78
    %138 = vmatpush.msra.mxu0 %v77
    %139 = vmatpush.msra.mxu0 %v76
    %140 = vmatpush.msra.mxu0 %v75
    %141 = vmatpush.msra.mxu0 %v74
    %142 = vmatpush.msra.mxu0 %v73
    %143 = vmatpush.msra.mxu0 %v72
    %144 = vmatmul.f32.gmra.mxu0 %v122
    %v145 = vpop.f32.mrf.mxu0
    %v146 = vadd.f32 %v126, %v145
    %147 = vmatmul.f32.gmra.mxu0 %v123
    %v148 = vpop.f32.mrf.mxu0
    %v149 = vadd.f32 %v126, %v148
    %150 = vdwg.mxu0
    %v151 = vlaneseq
    %v152 = vand.u32 %v151, 127
    %vm153 = vcmp.lt.s32.totalorder %v152, 4
    %vm154 = vcmp.ge.s32.totalorder %v152, 4
    %vm155 = vcmp.lt.s32.totalorder %v152, 8
    %vm156 = vmand %vm154, %vm155
    %v157 = vmul.f32 %v146, %v146
    %v158 = vmul.f32 %v149, %v149
    %v159 = vsel %vm153, %v157, 0.0
    %v160 = vsel %vm153, %v158, 0.0
    %161 = vadd.xlane.f32.xlu0 %v159
    %v162 = vpop.xlane.xlu0 %161
    %163 = vadd.xlane.f32.xlu0 %v160
    %v164 = vpop.xlane.xlu0 %163
    %v165 = vsel %vm156, %v157, 0.0
    %v166 = vsel %vm156, %v158, 0.0
    %167 = vadd.xlane.f32.xlu0 %v165
    %v168 = vpop.xlane.xlu0 %167
    %169 = vadd.xlane.f32.xlu0 %v166
    %v170 = vpop.xlane.xlu0 %169
    %v171 = vadd.f32 %v168, 1.0
    %v172 = vadd.f32 %v170, 1.0
    %v173 = vrsqrt.pop %v171
    %v174 = vmul.f32 %v173, %v171
    %v175 = vmul.f32 %v174, %v173
    %v176 = vmul.f32 0.5, %v175
    %v177 = vsub.f32 1.5, %v176
    %v178 = vmul.f32 %v173, %v177
    %v179 = vmul.f32 %v171, %v178
    %vm180 = vcmp.eq.f32.partialorder %v171, inf
    %v181 = vsel %vm180, %v171, %v179
    %vm182 = vcmp.eq.f32.partialorder %v171, 0.0
    %v183 = vand.u32 %v171, 2147483648
    %v184 = vsel %vm182, %v183, %v181
    %v185 = vrsqrt.pop %v172
    %v186 = vmul.f32 %v185, %v172
    %v187 = vmul.f32 %v186, %v185
    %v188 = vmul.f32 0.5, %v187
    %v189 = vsub.f32 1.5, %v188
    %v190 = vmul.f32 %v185, %v189
    %v191 = vmul.f32 %v172, %v190
    %vm192 = vcmp.eq.f32.partialorder %v172, inf
    %v193 = vsel %vm192, %v172, %v191
    %vm194 = vcmp.eq.f32.partialorder %v172, 0.0
    %v195 = vand.u32 %v172, 2147483648
    %v196 = vsel %vm194, %v195, %v193
    %v197 = vmax.f32 %v162, 1e-24
    %v198 = vmax.f32 %v164, 1e-24
    %v199 = vrsqrt.pop %v197
    %v200 = vmul.f32 %v199, %v197
    %v201 = vmul.f32 %v200, %v199
    %v202 = vmul.f32 0.5, %v201
    %v203 = vsub.f32 1.5, %v202
    %v204 = vmul.f32 %v199, %v203
    %vm205 = vweird.f32 %v197
    %vm206 = vweird.f32 %v199
    %vm207 = vmor %vm205, %vm206
    %v208 = vsel %vm207, %v199, %v204
    %v209 = vrsqrt.pop %v198
    %v210 = vmul.f32 %v209, %v198
    %v211 = vmul.f32 %v210, %v209
    %v212 = vmul.f32 0.5, %v211
    %v213 = vsub.f32 1.5, %v212
    %v214 = vmul.f32 %v209, %v213
    %vm215 = vweird.f32 %v198
    %vm216 = vweird.f32 %v209
    %vm217 = vmor %vm215, %vm216
    %v218 = vsel %vm217, %v209, %v214
    %v219 = vmul.f32 %v184, %v208
    %v220 = vmul.f32 %v196, %v218
    %v221 = vmul.f32 %v146, %v149
    %v222 = vsel %vm153, %v221, 0.0
    %223 = vadd.xlane.f32.xlu0 %v222
    %v224 = vpop.xlane.xlu0 %223
    %v225 = vsel %vm156, %v221, 0.0
    %226 = vadd.xlane.f32.xlu0 %v225
    %v227 = vpop.xlane.xlu0 %226
    %v228 = vmul.f32 %v219, %v220
    %v229 = vmul.f32 %v228, %v224
    %v230 = vsub.f32 %v229, %v227
    %vm231 = vcmp.gt.f32.partialorder %v230, 1.0
    %v232 = vmax.f32 %v230, 1.0
    %v233 = vsub.f32 %v232, 1.0
    %v234 = vadd.f32 %v232, 1.0
    %v235 = vmul.f32 %v233, %v234
    %v236 = vrsqrt.pop %v235
    %v237 = vmul.f32 %v236, %v235
    %v238 = vmul.f32 %v237, %v236
    %v239 = vmul.f32 0.5, %v238
    %v240 = vsub.f32 1.5, %v239
    %v241 = vmul.f32 %v236, %v240
    %v242 = vmul.f32 %v235, %v241
    %vm243 = vcmp.eq.f32.partialorder %v235, inf
    %v244 = vsel %vm243, %v235, %v242
    %vm245 = vcmp.eq.f32.partialorder %v235, 0.0
    %v246 = vand.u32 %v235, 2147483648
    %v247 = vsel %vm245, %v246, %v244
    %v248 = vadd.f32 %v232, %v247
    %v249 = vlog2.pop %v248
    %v250 = vmul.f32 %v249, 0.6931472
    %v251 = vmul.f32 %v250, %v250
    %v252 = vsub.f32 %v230, 1.0
    %v253 = vmul.f32 %v252, 2.0
    %v254 = vsel %vm231, %v251, %v253
    %v255 = vsel %vm156, %v146, 0.0
    %v256 = vsel %vm156, %v149, 0.0
    %vm257 = vcmp.eq.s32.totalorder %v152, 0
    %v258 = vsel %vm257, %v254, 0.0
    %v259 = vadd.f32 %v258, %v255
    %260 = vst [vmem:[#allocation8] sm:$0xff] %v259
    %261 = vst [vmem:[#allocation8 + $0x8] sm:$0xff] %v256
    // Predicated region
    $region34: #{tpu_custom_call.1} parent=1 // pred_check
      _
    $region35: #{tpu_custom_call.1} parent=1 // pred_check_branch
      %263 = sbr.rel (0) target = $region37
    $region36: #{tpu_custom_call.1} parent=1 // pred_region
      %265 = vsyncadd [#allocation4], 0
      %s267 = sshll.u32 [#allocation8], 4
      %s268 = int_to_ptr.vmem [resolvable:$true] %s267
      %s269 = sshll.u32 %s5, 4
      %s270 = int_to_ptr.hbm [resolvable:$true] %s269
      %272 = dma.vmem_to_hbm [thread:$0]  %s268, 256, %s270, [#allocation4]
    $region37: #{tpu_custom_call.1} parent=1 // pred_fallthru
      _
    // Predicated region
    $region38: #{tpu_custom_call.1} parent=1 // pred_check
      _
    $region39: #{tpu_custom_call.1} parent=1 // pred_check_branch
      %274 = sbr.rel (0) target = $region41
    $region40: #{tpu_custom_call.1} parent=1 // pred_region
      %276 = dma.done [#allocation4], 256
    $region41: #{tpu_custom_call.1} parent=1 // pred_fallthru
      _
    %277 = vsyncpa [#allocation3], 1
    %278 = vsyncpa [#allocation6], 1
    %279 = vsyncpa [#allocation4], 1

</llo_original>
